<compile_context>
chip_gen: v7x
topology: tpu7x:2x2x1
jax: 0.10.0
libtpu: 0.0.40
codegen_flags: <defaults>
</compile_context>

<pallas_src>
import functools

import jax
import jax.numpy as jnp
from jax import lax
from jax.experimental import pallas as pl
from jax.experimental.pallas import tpu as pltpu


def _round_up(v, m):
    return ((v + m - 1) // m) * m


def _pick_tile(n):
    """Dst-row tile: keep adj double-buffer + f32 temporaries ~<= 20 MiB."""
    n16 = _round_up(max(n, 16), 16)
    budget = 20 * 1024 * 1024
    per_row = 28 * n16 + 512          # bf16 adj x2 buffers + ~6 f32 [T,N] temps
    t = budget // per_row
    t = max(16, min(256, (t // 16) * 16))
    return min(t, n16)


def _vmem_limit(tile, n_pad, hc, out_dim, heads, n_outs):
    adj = 2 * tile * n_pad * 2                              # bf16, double buffer
    resident = 2 * (n_pad * hc + n_pad * 2 * heads) * 4     # h + s (full, x2 buf)
    io = 2 * (tile * 2 * heads + n_outs * tile * out_dim + out_dim) * 4
    temps = 6 * tile * n_pad * 4                            # e / p intermediates
    est = adj + resident + io + temps + (4 << 20)
    return int(min(max(est, 32 << 20), 128 << 20))


def _vmem():
    return pl.BlockSpec(memory_space=pltpu.MemorySpace.VMEM)


# --------------------------------------------------------------------------
# Phase 1: h = x @ W and per-head attention scores s = h @ A   (one MXU pass)
#   A is a [H*C, 2H] block-diagonal packing of att_src (cols 0..H-1) and
#   att_dst (cols H..2H-1) so all heads' scores come out lane-dense at once.
# --------------------------------------------------------------------------
def _gat_pre_kernel(x_ref, w_ref, a_ref, h_ref, s_ref):
    h = jnp.dot(x_ref[...], w_ref[...], preferred_element_type=jnp.float32)
    h_ref[...] = h
    s_ref[...] = jnp.dot(h, a_ref[...], preferred_element_type=jnp.float32)


# --------------------------------------------------------------------------
# Phase 2: masked attention softmax + aggregation over a dst-row tile.
# --------------------------------------------------------------------------
def _gat_attn_kernel(s_dst_ref, s_src_ref, h_ref, adjb_ref, bias_ref,
                     *out_refs, heads, out_ch, concat, final_lsm):
    emb_ref = out_refs[0]

    s_dst = s_dst_ref[...]                                   # [T, 2H]
    s_src = s_src_ref[...]                                   # [Np, 2H]
    h = h_ref[...]                                           # [Np, H*C]
    adj_bias = adjb_ref[...].astype(jnp.float32)             # [T, Np] (0 / -1e9)
    bias = bias_ref[...]                                     # [1, out_dim]

    head_outs = []
    for hd in range(heads):                                  # static unroll
        a_dst = s_dst[:, heads + hd:heads + hd + 1]          # [T, 1]
        a_src = jnp.transpose(s_src[:, hd:hd + 1])           # [1, Np]
        e = a_dst + a_src                                    # [T, Np]
        e = jnp.maximum(e, jnp.float32(0.2) * e)             # LeakyReLU(0.2)
        e = e + adj_bias                                     # additive edge mask
        m = jnp.max(e, axis=-1, keepdims=True)
        p = jnp.exp(e - m)
        rs = jnp.sum(p, axis=-1, keepdims=True)
        o = jnp.dot(p, h[:, hd * out_ch:(hd + 1) * out_ch],
                    preferred_element_type=jnp.float32)      # [T, C]
        head_outs.append(o * pl.reciprocal(rs, approx=True)) # deferred norm

    if concat:
        out = jnp.concatenate(head_outs, axis=-1)            # one dense store
    else:
        out = head_outs[0]
        for o in head_outs[1:]:
            out = out + o
        out = out * jnp.float32(1.0 / heads)
    out = out + bias
    emb_ref[...] = out

    if final_lsm:                                            # fused log_softmax
        lsm_ref = out_refs[1]
        mm = jnp.max(out, axis=-1, keepdims=True)
        sh = out - mm
        lse = jnp.log(jnp.sum(jnp.exp(sh), axis=-1, keepdims=True))
        lsm_ref[...] = sh - lse


def gat_conv(x, adj_bias, p, tile, *, final=False):
    n = x.shape[0]
    n_pad = adj_bias.shape[0]
    if n_pad != n:
        x = jnp.pad(x, ((0, n_pad - n), (0, 0)))

    heads, out_ch, concat = p["heads"], p["out_ch"], p["concat"]
    hc = heads * out_ch
    out_dim = hc if concat else out_ch
    f_in = x.shape[1]
    grid = (n_pad // tile,)
    n_outs = 2 if final else 1
    vlimit = _vmem_limit(tile, n_pad, hc, out_dim, heads, n_outs)
    cparams = pltpu.CompilerParams(dimension_semantics=("parallel",),
                                   vmem_limit_bytes=vlimit)

    # --- phase 1: h and all-head scores, computed once, row-tiled ---
    h, s = pl.pallas_call(
        _gat_pre_kernel,
        out_shape=(jax.ShapeDtypeStruct((n_pad, hc), jnp.float32),
                   jax.ShapeDtypeStruct((n_pad, 2 * heads), jnp.float32)),
        grid=grid,
        in_specs=[pl.BlockSpec((tile, f_in), lambda i: (i, 0)),
                  pl.BlockSpec((f_in, hc), lambda i: (0, 0)),
                  pl.BlockSpec((hc, 2 * heads), lambda i: (0, 0))],
        out_specs=(pl.BlockSpec((tile, hc), lambda i: (i, 0)),
                   pl.BlockSpec((tile, 2 * heads), lambda i: (i, 0))),
        compiler_params=cparams,
    )(x, p["W"], p["A"])

    # --- phase 2: attention over dst-row tiles ---
    kernel = functools.partial(_gat_attn_kernel, heads=heads, out_ch=out_ch,
                               concat=concat, final_lsm=final)
    in_specs = [pl.BlockSpec((tile, 2 * heads), lambda i: (i, 0)),    # s (dst)
                pl.BlockSpec((n_pad, 2 * heads), lambda i: (0, 0)),   # s (src)
                pl.BlockSpec((n_pad, hc), lambda i: (0, 0)),          # h (src)
                pl.BlockSpec((tile, n_pad), lambda i: (i, 0)),        # adj bias
                pl.BlockSpec((1, out_dim), lambda i: (0, 0))]         # conv bias
    out_block = pl.BlockSpec((tile, out_dim), lambda i: (i, 0))

    if final:
        emb, lsm = pl.pallas_call(
            kernel,
            out_shape=(jax.ShapeDtypeStruct((n_pad, out_dim), jnp.float32),
                       jax.ShapeDtypeStruct((n_pad, out_dim), jnp.float32)),
            grid=grid, in_specs=in_specs, out_specs=(out_block, out_block),
            compiler_params=cparams,
        )(s, s, h, adj_bias, p["bias"])
        return emb[:n], lsm[:n]

    out = pl.pallas_call(
        kernel,
        out_shape=jax.ShapeDtypeStruct((n_pad, out_dim), jnp.float32),
        grid=grid, in_specs=in_specs, out_specs=out_block,
        compiler_params=cparams,
    )(s, s, h, adj_bias, p["bias"])
    return out[:n]


# --------------------------------------------------------------------------
# BatchNorm1d kernel (training-mode batch statistics, eps=1e-5).
# Column stats need all rows, so this stays a separate small [N, C] kernel.
# --------------------------------------------------------------------------
def _bn_kernel(x_ref, gamma_ref, beta_ref, out_ref):
    x = x_ref[...]
    mean = jnp.mean(x, axis=0, keepdims=True)
    d = x - mean
    var = jnp.mean(d * d, axis=0, keepdims=True)
    inv = lax.rsqrt(var + jnp.float32(1e-5))
    out_ref[...] = d * inv * gamma_ref[...] + beta_ref[...]


def batch_norm(x, gamma, beta):
    return pl.pallas_call(
        _bn_kernel,
        out_shape=jax.ShapeDtypeStruct(x.shape, jnp.float32),
        in_specs=[_vmem()] * 3,
        out_specs=_vmem(),
    )(x, gamma, beta)


# --------------------------------------------------------------------------
# Parameter init (deterministic, glorot for W/att, zeros for bias) + forward
# --------------------------------------------------------------------------
def _glorot(key, shape):
    fan_in = shape[-2] if len(shape) > 1 else shape[0]
    fan_out = shape[-1]
    limit = jnp.sqrt(6.0 / (fan_in + fan_out))
    return jax.random.uniform(key, shape, jnp.float32, -limit, limit)


def _pack_att(att_src, att_dst):
    """[H, C] x2 -> [H*C, 2H] block-diagonal matrix so s = h @ A gives all
    heads' src scores (cols 0..H-1) and dst scores (cols H..2H-1) in one dot."""
    h, c = att_src.shape
    a = jnp.zeros((h * c, 2 * h), jnp.float32)
    for hd in range(h):
        a = a.at[hd * c:(hd + 1) * c, hd].set(att_src[hd])
        a = a.at[hd * c:(hd + 1) * c, h + hd].set(att_dst[hd])
    return a


def init_gat_params(key, num_layers, hidden_unit, input_dim, output_dim, heads):
    convs = []
    in_dim = input_dim
    for layer in range(num_layers):
        if layer < num_layers - 1:
            h, oc, concat = heads, hidden_unit, True
        else:
            h, oc, concat = 1, output_dim, False
        key, k1, k2, k3 = jax.random.split(key, 4)
        att_src = _glorot(k2, (h, oc))
        att_dst = _glorot(k3, (h, oc))
        convs.append(dict(
            W=_glorot(k1, (in_dim, h * oc)),
            A=_pack_att(att_src, att_dst),
            bias=jnp.zeros((1, h * oc if concat else oc), jnp.float32),
            heads=h, out_ch=oc, concat=concat))
        in_dim = h * oc if concat else oc
    bns = [(jnp.ones((1, hidden_unit * heads), jnp.float32),
            jnp.zeros((1, hidden_unit * heads), jnp.float32))
           for _ in range(num_layers - 1)]
    return convs, bns


def build_adj_bias(edge_index, num_nodes, n_pad):
    """Additive attention mask: 0.0 where edge src->dst (or self-loop) exists,
    -1e9 elsewhere (and on all padded rows/cols). Stored in bf16 to halve the
    dominant N^2 HBM/VMEM traffic."""
    src, dst = edge_index[0], edge_index[1]
    adj = jnp.zeros((n_pad, n_pad), jnp.float32)
    adj = adj.at[dst, src].set(1.0)
    idx = jnp.arange(num_nodes)
    adj = adj.at[idx, idx].set(1.0)                 # self-loops (real nodes only)
    return ((adj - 1.0) * jnp.float32(1e9)).astype(jnp.bfloat16)


def gat_forward(x, edge_index, convs, bns, tile=None):
    n = x.shape[0]
    if tile is None:
        tile = _pick_tile(n)
    tile = max(16, (tile // 16) * 16)
    n_pad = _round_up(n, tile)
    adj_bias = build_adj_bias(edge_index, n, n_pad)

    num_layers = len(convs)
    for i in range(num_layers - 1):
        x = gat_conv(x, adj_bias, convs[i], tile)
        x = batch_norm(x, *bns[i])
    emb, out = gat_conv(x, adj_bias, convs[num_layers - 1], tile, final=True)
    return {"out": out, "emb": emb}


if __name__ == "__main__":
    # Deterministic small example: N=128 nodes, input_dim=16, hidden=8,
    # heads=2, output_dim=4, num_layers=3; tile=64 -> 2-tile "parallel" grid.
    num_layers, hidden_unit, input_dim, output_dim, heads = 3, 8, 16, 4, 2
    N, E = 128, 512

    key = jax.random.PRNGKey(0)
    kx, ke, kp = jax.random.split(key, 3)
    x = jax.random.normal(kx, (N, input_dim), jnp.float32)
    edge_index = jax.random.randint(ke, (2, E), 0, N, jnp.int32)

    convs, bns = init_gat_params(kp, num_layers, hidden_unit, input_dim,
                                 output_dim, heads)

    result = gat_forward(x, edge_index, convs, bns, tile=64)
    jax.block_until_ready(result["out"])
    jax.block_until_ready(result["emb"])

    assert result["out"].shape == (N, output_dim)
    assert result["emb"].shape == (N, output_dim)
    assert bool(jnp.all(jnp.isfinite(result["out"])))
    assert bool(jnp.all(jnp.isfinite(result["emb"])))
    print("KERNEL_OK")
</pallas_src>

<mosaic_0001>
module attributes {stable_mosaic.version = 11 : i64} {
  func.func @_gat_pre_kernel(%arg0: i32, %arg1: memref<64x16xf32, #tpu.memory_space<vmem>>, %arg2: memref<16x16xf32, #tpu.memory_space<vmem>>, %arg3: memref<16x4xf32, #tpu.memory_space<vmem>>, %arg4: memref<64x16xf32, #tpu.memory_space<vmem>>, %arg5: memref<64x4xf32, #tpu.memory_space<vmem>>) attributes {dimension_semantics = [#tpu.dimension_semantics<parallel>], iteration_bounds = array<i64: 2>, scalar_prefetch = 0 : i64, scratch_operands = 0 : i64, tpu.core_type = #tpu.core_type<tc>, window_params = [{transform_indices = @transform_0, window_bounds = array<i64: 64, 16>}, {pipeline_mode = #tpu.pipeline_mode<synchronous>, transform_indices = @transform_1, window_bounds = array<i64: 16, 16>}, {pipeline_mode = #tpu.pipeline_mode<synchronous>, transform_indices = @transform_2, window_bounds = array<i64: 16, 4>}, {transform_indices = @transform_3, window_bounds = array<i64: 64, 16>}, {transform_indices = @transform_4, window_bounds = array<i64: 64, 4>}]} {
    %c0 = arith.constant 0 : index
    %c0_0 = arith.constant 0 : index
    %0 = vector.load %arg1[%c0, %c0_0] : memref<64x16xf32, #tpu.memory_space<vmem>>, vector<64x16xf32>
    %c0_1 = arith.constant 0 : index
    %c0_2 = arith.constant 0 : index
    %1 = vector.load %arg2[%c0_1, %c0_2] : memref<16x16xf32, #tpu.memory_space<vmem>>, vector<16x16xf32>
    %cst = arith.constant dense<0.000000e+00> : vector<64x16xf32>
    %2 = tpu.matmul %0, %1, %cst {dimension_numbers = #tpu.dot_dimension_numbers<[1], [0], [0], [1], [0, 0, 1, 1], [], []>} : vector<64x16xf32>, vector<16x16xf32>, vector<64x16xf32> -> vector<64x16xf32>
    %c0_3 = arith.constant 0 : index
    %c0_4 = arith.constant 0 : index
    %3 = vector.load %arg4[%c0_3, %c0_4] : memref<64x16xf32, #tpu.memory_space<vmem>>, vector<64x16xf32>
    tpu.vector_store %arg4[%c0_3, %c0_4], %2 {strides = array<i32>} : memref<64x16xf32, #tpu.memory_space<vmem>>, vector<64x16xf32>,
    %c0_5 = arith.constant 0 : index
    %c0_6 = arith.constant 0 : index
    %4 = vector.load %arg3[%c0_5, %c0_6] : memref<16x4xf32, #tpu.memory_space<vmem>>, vector<16x4xf32>
    %cst_7 = arith.constant dense<0.000000e+00> : vector<64x4xf32>
    %5 = tpu.matmul %2, %4, %cst_7 {dimension_numbers = #tpu.dot_dimension_numbers<[1], [0], [0], [1], [0, 0, 1, 1], [], []>} : vector<64x16xf32>, vector<16x4xf32>, vector<64x4xf32> -> vector<64x4xf32>
    %c0_8 = arith.constant 0 : index
    %c0_9 = arith.constant 0 : index
    %6 = vector.load %arg5[%c0_8, %c0_9] : memref<64x4xf32, #tpu.memory_space<vmem>>, vector<64x4xf32>
    tpu.vector_store %arg5[%c0_8, %c0_9], %5 {strides = array<i32>} : memref<64x4xf32, #tpu.memory_space<vmem>>, vector<64x4xf32>,
    return
  }
  func.func @transform_0(%arg0: i32) -> (i32, i32) {
    %c0_i32 = arith.constant 0 : i32
    %c0_i32_0 = arith.constant 0 : i32
    return %arg0, %c0_i32 : i32, i32
  }
  func.func @transform_1(%arg0: i32) -> (i32, i32) {
    %c0_i32 = arith.constant 0 : i32
    %c0_i32_0 = arith.constant 0 : i32
    %c0_i32_1 = arith.constant 0 : i32
    return %c0_i32, %c0_i32_0 : i32, i32
  }
  func.func @transform_2(%arg0: i32) -> (i32, i32) {
    %c0_i32 = arith.constant 0 : i32
    %c0_i32_0 = arith.constant 0 : i32
    %c0_i32_1 = arith.constant 0 : i32
    return %c0_i32, %c0_i32_0 : i32, i32
  }
  func.func @transform_3(%arg0: i32) -> (i32, i32) {
    %c0_i32 = arith.constant 0 : i32
    %c0_i32_0 = arith.constant 0 : i32
    return %arg0, %c0_i32 : i32, i32
  }
  func.func @transform_4(%arg0: i32) -> (i32, i32) {
    %c0_i32 = arith.constant 0 : i32
    %c0_i32_0 = arith.constant 0 : i32
    return %arg0, %c0_i32 : i32, i32
  }
}

</mosaic_0001>

<llo_original>
// kernel: tpu_custom_call.1
$region0: #{tpu_custom_call.1}
  #allocation0 [shape = 'u32[]', space=smem, size = 0x4, offset = 0x4, fixed_abs, tag = 'smem constant byte address 0x4 - core index']
  #allocation1 [shape = 'u32[144,128]{1,0:T(1,128)}', space=vmem, size = 0x12000, scoped, tag = 'internal scratch']
  %s0 = inlined_call_operand.vmem [shape: f32[128,16], index: 0, kind: input, shape index: {}]
  %s1 = inlined_call_operand.vmem [shape: f32[16,16], index: 1, kind: input, shape index: {}]
  %s2 = inlined_call_operand.vmem [shape: f32[16,4], index: 2, kind: input, shape index: {}]
  %s3 = inlined_call_operand.vmem [shape: f32[128,16], index: 3, kind: output, shape index: {0}]
  %s4 = inlined_call_operand.vmem [shape: f32[128,4], index: 4, kind: output, shape index: {1}]
  %5 = xla_tuple %s3, %s4
  %s6 = sld [smem:[#allocation0]]
  $region53: #{tpu_custom_call.1} parent=0
    _
  %s8 = ssub.s32 1, %s6
  %s9 = scalar_select 0, %s8, %s6
  loop: start=0, step=1, limit=4
  $region2: #{tpu_custom_call.1} parent=0 // loop_pre_header
    _
  $region3: #{tpu_custom_call.1} parent=0 // loop_header
    %s11 = sphi 0, %s15
    %p12 = scmp.ge.s32.totalorder %s11, 4
    %s21 = sphi 0, %s23
    %s24 = sphi 0, %s21
    %s25 = sphi 0, %s24
    %s41 = sphi 0, %s25
    %s45 = sphi 0, %s45
    %s47 = sphi 0, %s45
    %s48 = sphi 0, %s47
    %s62 = sphi 0, %s48
    %s66 = sphi 0, %s66
    %s68 = sphi 0, %s66
    %s69 = sphi 0, %s68
    %s83 = sphi 0, %s69
    %s89 = sphi 0, %s91
    %s92 = sphi 0, %s89
    %s93 = sphi 0, %s92
    %s109 = sphi 0, %s93
    %s115 = sphi 0, %s117
    %s118 = sphi 0, %s115
    %s119 = sphi 0, %s118
    %s135 = sphi 0, %s119
  $region4: #{tpu_custom_call.1} parent=0 // loop_header_branch
    %14 = sbr.rel (%p12) target = $region8
  $region5: #{tpu_custom_call.1} parent=0 // loop_body
    %s16 = ssub.s32 %s11, 1
    %s17 = ssub.s32 %s11, 2
    %s18 = sadd.s32 %s11, 1
    %s19 = ssub.s32 %s11, %s18
    %p20 = scmp.eq.s32.totalorder %s19, 0
    %s22 = sadd.s32 %s21, 1
    %s23 = scalar_select %p20, %s21, %s22
    %p26 = pneg %p20
    %p27 = scmp.eq.s32.totalorder %s11, 1
    %p28 = por %p26, %p27
    %p29 = scmp.ne.s32.totalorder %s21, %s24
    %p30 = scmp.eq.s32.totalorder %s11, 0
    %p31 = por %p29, %p30
    %p32 = scmp.ne.s32.totalorder %s21, %s24
    %p33 = scmp.eq.s32.totalorder %s16, 1
    %p34 = por %p32, %p33
    %p35 = scmp.ne.s32.totalorder %s24, %s25
    %p36 = scmp.eq.s32.totalorder %s16, 0
    %p37 = por %p35, %p36
    %p38 = scmp.ne.s32.totalorder %s24, %s25
    %p39 = scmp.eq.s32.totalorder %s17, 1
    %p40 = por %p38, %p39
    %p42 = scmp.ne.s32.totalorder %s25, %s41
    %p43 = scmp.eq.s32.totalorder %s17, 0
    %p44 = por %p42, %p43
    %s46 = sadd.s32 %s45, 1
    %p49 = scmp.eq.s32.totalorder %s11, 1
    %p50 = scmp.ne.s32.totalorder %s45, %s47
    %p51 = scmp.eq.s32.totalorder %s11, 0
    %p52 = por %p50, %p51
    %p53 = scmp.ne.s32.totalorder %s45, %s47
    %p54 = scmp.eq.s32.totalorder %s16, 1
    %p55 = por %p53, %p54
    %p56 = scmp.ne.s32.totalorder %s47, %s48
    %p57 = scmp.eq.s32.totalorder %s16, 0
    %p58 = por %p56, %p57
    %p59 = scmp.ne.s32.totalorder %s47, %s48
    %p60 = scmp.eq.s32.totalorder %s17, 1
    %p61 = por %p59, %p60
    %p63 = scmp.ne.s32.totalorder %s48, %s62
    %p64 = scmp.eq.s32.totalorder %s17, 0
    %p65 = por %p63, %p64
    %s67 = sadd.s32 %s66, 1
    %p70 = scmp.eq.s32.totalorder %s11, 1
    %p71 = scmp.ne.s32.totalorder %s66, %s68
    %p72 = scmp.eq.s32.totalorder %s11, 0
    %p73 = por %p71, %p72
    %p74 = scmp.ne.s32.totalorder %s66, %s68
    %p75 = scmp.eq.s32.totalorder %s16, 1
    %p76 = por %p74, %p75
    %p77 = scmp.ne.s32.totalorder %s68, %s69
    %p78 = scmp.eq.s32.totalorder %s16, 0
    %p79 = por %p77, %p78
    %p80 = scmp.ne.s32.totalorder %s68, %s69
    %p81 = scmp.eq.s32.totalorder %s17, 1
    %p82 = por %p80, %p81
    %p84 = scmp.ne.s32.totalorder %s69, %s83
    %p85 = scmp.eq.s32.totalorder %s17, 0
    %p86 = por %p84, %p85
    %s87 = ssub.s32 %s11, %s18
    %p88 = scmp.eq.s32.totalorder %s87, 0
    %s90 = sadd.s32 %s89, 1
    %s91 = scalar_select %p88, %s89, %s90
    %p94 = pneg %p88
    %p95 = scmp.eq.s32.totalorder %s11, 1
    %p96 = por %p94, %p95
    %p97 = scmp.ne.s32.totalorder %s89, %s92
    %p98 = scmp.eq.s32.totalorder %s11, 0
    %p99 = por %p97, %p98
    %p100 = scmp.ne.s32.totalorder %s89, %s92
    %p101 = scmp.eq.s32.totalorder %s16, 1
    %p102 = por %p100, %p101
    %p103 = scmp.ne.s32.totalorder %s92, %s93
    %p104 = scmp.eq.s32.totalorder %s16, 0
    %p105 = por %p103, %p104
    %p106 = scmp.ne.s32.totalorder %s92, %s93
    %p107 = scmp.eq.s32.totalorder %s17, 1
    %p108 = por %p106, %p107
    %p110 = scmp.ne.s32.totalorder %s93, %s109
    %p111 = scmp.eq.s32.totalorder %s17, 0
    %p112 = por %p110, %p111
    %s113 = ssub.s32 %s11, %s18
    %p114 = scmp.eq.s32.totalorder %s113, 0
    %s116 = sadd.s32 %s115, 1
    %s117 = scalar_select %p114, %s115, %s116
    %p120 = pneg %p114
    %p121 = scmp.eq.s32.totalorder %s11, 1
    %p122 = por %p120, %p121
    %p123 = scmp.ne.s32.totalorder %s115, %s118
    %p124 = scmp.eq.s32.totalorder %s11, 0
    %p125 = por %p123, %p124
    %p126 = scmp.ne.s32.totalorder %s115, %s118
    %p127 = scmp.eq.s32.totalorder %s16, 1
    %p128 = por %p126, %p127
    %p129 = scmp.ne.s32.totalorder %s118, %s119
    %p130 = scmp.eq.s32.totalorder %s16, 0
    %p131 = por %p129, %p130
    %p132 = scmp.ne.s32.totalorder %s118, %s119
    %p133 = scmp.eq.s32.totalorder %s17, 1
    %p134 = por %p132, %p133
    %p136 = scmp.ne.s32.totalorder %s119, %s135
    %p137 = scmp.eq.s32.totalorder %s17, 0
    %p138 = por %p136, %p137
    %p139 = scmp.le.s32.totalorder 1, %s11
    %p140 = scmp.lt.s32.totalorder %s11, 3
    %p141 = pnand %p139, %p140
    %p142 = pneg %p141
    // Predicated region
    $region9: #{tpu_custom_call.1} parent=5 // pred_check
      _
    $region10: #{tpu_custom_call.1} parent=5 // pred_check_branch
      %144 = sbr.rel (%p141) target = $region12
    $region11: #{tpu_custom_call.1} parent=5 // pred_region
      %s145 = ssub.s32 %s11, 1
      // Predicated region
      $region13: #{tpu_custom_call.1} parent=11 // pred_check
        %p146 = pneg %p58
      $region14: #{tpu_custom_call.1} parent=11 // pred_check_branch
        %148 = sbr.rel (%p146) target = $region16
      $region15: #{tpu_custom_call.1} parent=11 // pred_region
        _
      $region16: #{tpu_custom_call.1} parent=11 // pred_fallthru
        _
      // Predicated region
      $region17: #{tpu_custom_call.1} parent=11 // pred_check
        %p149 = pneg %p79
      $region18: #{tpu_custom_call.1} parent=11 // pred_check_branch
        %151 = sbr.rel (%p149) target = $region20
      $region19: #{tpu_custom_call.1} parent=11 // pred_region
        _
      $region20: #{tpu_custom_call.1} parent=11 // pred_fallthru
        _
    $region12: #{tpu_custom_call.1} parent=5 // pred_fallthru
      _
    %p152 = scmp.lt.s32.totalorder %s11, 2
    // Predicated region
    $region21: #{tpu_custom_call.1} parent=5 // pred_check
      %p153 = pneg %p152
    $region22: #{tpu_custom_call.1} parent=5 // pred_check_branch
      %155 = sbr.rel (%p153) target = $region24
    $region23: #{tpu_custom_call.1} parent=5 // pred_region
      // Predicated region
      $region25: #{tpu_custom_call.1} parent=23 // pred_check
        %p156 = pneg %p31
      $region26: #{tpu_custom_call.1} parent=23 // pred_check_branch
        %158 = sbr.rel (%p156) target = $region28
      $region27: #{tpu_custom_call.1} parent=23 // pred_region
        %s159 = smul.u32 8, %s11
        %p160 = scmp.lt.s32.totalorder %s159, 15
        %s161 = scalar_select %p160, %s159, 15
        %s162 = smul.addr %s161, 8
        %s163 = scalar_lea.vmem %s0, %s162
        %s164 = smul.u32 8, %s11
      $region28: #{tpu_custom_call.1} parent=23 // pred_fallthru
        _
    $region24: #{tpu_custom_call.1} parent=5 // pred_fallthru
      _
    %p165 = scmp.le.s32.totalorder 1, %s11
    %p166 = scmp.lt.s32.totalorder %s11, 3
    %p167 = pnand %p165, %p166
    %p168 = pneg %p167
    // Predicated region
    $region29: #{tpu_custom_call.1} parent=5 // pred_check
      _
    $region30: #{tpu_custom_call.1} parent=5 // pred_check_branch
      %170 = sbr.rel (%p167) target = $region32
    $region31: #{tpu_custom_call.1} parent=5 // pred_region
      %s171 = ssub.s32 %s11, 1
      %s172 = smul.u32 8, %s16
      %p173 = scmp.lt.s32.totalorder %s172, 15
      %s174 = scalar_select %p173, %s172, 15
      %s175 = smul.addr %s174, 8
      %s176 = scalar_lea.vmem %s0, %s175
      %p177 = pneg %p37
      %p178 = pneg %p34
      %p179 = pneg %p58
      %p180 = pneg %p55
      %p181 = pneg %p79
      %p182 = pneg %p76
      %p183 = pneg %p105
      %p184 = pneg %p102
      %s185 = smul.u32 8, %s16
      %p186 = scmp.lt.s32.totalorder %s185, 15
      %s187 = scalar_select %p186, %s185, 15
      %s188 = smul.addr %s187, 8
      %s189 = scalar_lea.vmem %s3, %s188
      %p190 = pneg %p131
      %p191 = pneg %p128
      %s192 = smul.u32 8, %s16
      %p193 = scmp.lt.s32.totalorder %s192, 15
      %s194 = scalar_select %p193, %s192, 15
      %s195 = smul.addr %s194, 8
      %s196 = scalar_lea.vmem %s4, %s195
      %s197 = smul.u32 8, %s16
      %p198 = scmp.lt.s32.totalorder %s197, 15
      %s199 = scalar_select %p198, %s197, 15
      %s200 = smul.addr %s199, 8
      %s201 = scalar_lea.vmem %s0, %s200
      %s202 = smul.u32 8, %s16
      %s203 = smul.u32 8, %s16
      %p204 = scmp.lt.s32.totalorder %s203, 15
      %s205 = scalar_select %p204, %s203, 15
      %s206 = smul.addr %s205, 8
      %s207 = scalar_lea.vmem %s3, %s206
      %s208 = smul.u32 8, %s16
      %s209 = smul.u32 8, %s16
      %p210 = scmp.lt.s32.totalorder %s209, 15
      %s211 = scalar_select %p210, %s209, 15
      %s212 = smul.addr %s211, 8
      %s213 = scalar_lea.vmem %s4, %s212
      %s214 = smul.u32 8, %s16
      %v215 = vld [vmem:[%s201] sm:$0xff]
      %v216 = vld [vmem:[%s201 + $0x8] sm:$0xff]
      %v217 = vld [vmem:[%s201 + $0x10] sm:$0xff]
      %v218 = vld [vmem:[%s201 + $0x18] sm:$0xff]
      %v219 = vld [vmem:[%s201 + $0x20] sm:$0xff]
      %v220 = vld [vmem:[%s201 + $0x28] sm:$0xff]
      %v221 = vld [vmem:[%s201 + $0x30] sm:$0xff]
      %v222 = vld [vmem:[%s201 + $0x38] sm:$0xff]
      %v223 = vld [vmem:[%s1] sm:$0xff]
      %v224 = vld [vmem:[%s1 + $0x8] sm:$0xff]
      %vm225 = vcmask 130048
      %v227 = vsel %vm225, %v215, 0
      %v230 = vsel %vm225, %v216, 0
      %v233 = vsel %vm225, %v217, 0
      %v236 = vsel %vm225, %v218, 0
      %v239 = vsel %vm225, %v219, 0
      %v242 = vsel %vm225, %v220, 0
      %v245 = vsel %vm225, %v221, 0
      %v248 = vsel %vm225, %v222, 0
      %250 = vmatprep.subr.mxu0 0.0
      %251 = vmatpush1.msra.mxu0 %v223
      %252 = vmatprep.subr.mxu0 0.0
      %253 = vmatpush1.msra.mxu0 %v224
      %254 = vmatprep.subr.mxu0 0.0
      %255 = vmatpush1.msra.mxu0 0.0
      %256 = vmatprep.subr.mxu0 0.0
      %257 = vmatpush1.msra.mxu0 0.0
      %258 = vmatprep.subr.mxu0 0.0
      %259 = vmatpush1.msra.mxu0 0.0
      %260 = vmatprep.subr.mxu0 0.0
      %261 = vmatpush1.msra.mxu0 0.0
      %262 = vmatprep.subr.mxu0 0.0
      %263 = vmatpush1.msra.mxu0 0.0
      %264 = vmatprep.subr.mxu0 0.0
      %265 = vmatpush1.msra.mxu0 0.0
      %266 = vmatprep.subr.mxu0 0.0
      %267 = vmatpush1.msra.mxu0 0.0
      %268 = vmatprep.subr.mxu0 0.0
      %269 = vmatpush1.msra.mxu0 0.0
      %270 = vmatprep.subr.mxu0 0.0
      %271 = vmatpush1.msra.mxu0 0.0
      %272 = vmatprep.subr.mxu0 0.0
      %273 = vmatpush1.msra.mxu0 0.0
      %274 = vmatprep.subr.mxu0 0.0
      %275 = vmatpush1.msra.mxu0 0.0
      %276 = vmatprep.subr.mxu0 0.0
      %277 = vmatpush1.msra.mxu0 0.0
      %278 = vmatprep.subr.mxu0 0.0
      %279 = vmatpush1.msra.mxu0 0.0
      %280 = vmatprep.subr.mxu0 0.0
      %281 = vmatpush1.msra.mxu0 0.0
      %282 = vmatprep.subr.mxu0 0.0
      %283 = vmatpush1.msra.mxu0 0.0
      %284 = vmatprep.subr.mxu0 0.0
      %285 = vmatpush1.msra.mxu0 0.0
      %286 = vmatprep.subr.mxu0 0.0
      %287 = vmatpush1.msra.mxu0 0.0
      %288 = vmatprep.subr.mxu0 0.0
      %289 = vmatpush1.msra.mxu0 0.0
      %290 = vmatprep.subr.mxu0 0.0
      %291 = vmatpush1.msra.mxu0 0.0
      %292 = vmatprep.subr.mxu0 0.0
      %293 = vmatpush1.msra.mxu0 0.0
      %294 = vmatprep.subr.mxu0 0.0
      %295 = vmatpush1.msra.mxu0 0.0
      %296 = vmatprep.subr.mxu0 0.0
      %297 = vmatpush1.msra.mxu0 0.0
      %298 = vmatprep.subr.mxu0 0.0
      %299 = vmatpush1.msra.mxu0 0.0
      %300 = vmatprep.subr.mxu0 0.0
      %301 = vmatpush1.msra.mxu0 0.0
      %302 = vmatprep.subr.mxu0 0.0
      %303 = vmatpush1.msra.mxu0 0.0
      %304 = vmatprep.subr.mxu0 0.0
      %305 = vmatpush1.msra.mxu0 0.0
      %306 = vmatprep.subr.mxu0 0.0
      %307 = vmatpush1.msra.mxu0 0.0
      %308 = vmatprep.subr.mxu0 0.0
      %309 = vmatpush1.msra.mxu0 0.0
      %310 = vmatprep.subr.mxu0 0.0
      %311 = vmatpush1.msra.mxu0 0.0
      %312 = vmatprep.subr.mxu0 0.0
      %313 = vmatpush1.msra.mxu0 0.0
      %314 = vmatprep.mubr.f32.mxu0 0.0
      %315 = vmatmul.mubr.f32.gmra.mrb[0].mxu0 %v227
      %v316 = vpop.f32.mrb[0].mxu0
      %v317 = vadd.f32 0.0, %v316
      %v318 = vpop.f32.mrb[0].mxu0
      %319 = vmatprep.mubr.f32.mxu0 0.0
      %320 = vmatmul.mubr.f32.gmra.mrb[0].mxu0 %v230
      %v321 = vpop.f32.mrb[0].mxu0
      %v322 = vadd.f32 0.0, %v321
      %v323 = vpop.f32.mrb[0].mxu0
      %324 = vmatprep.mubr.f32.mxu0 0.0
      %325 = vmatmul.mubr.f32.gmra.mrb[0].mxu0 %v233
      %v326 = vpop.f32.mrb[0].mxu0
      %v327 = vadd.f32 0.0, %v326
      %v328 = vpop.f32.mrb[0].mxu0
      %329 = vmatprep.mubr.f32.mxu0 0.0
      %330 = vmatmul.mubr.f32.gmra.mrb[0].mxu0 %v236
      %v331 = vpop.f32.mrb[0].mxu0
      %v332 = vadd.f32 0.0, %v331
      %v333 = vpop.f32.mrb[0].mxu0
      %334 = vmatprep.mubr.f32.mxu0 0.0
      %335 = vmatmul.mubr.f32.gmra.mrb[0].mxu0 %v239
      %v336 = vpop.f32.mrb[0].mxu0
      %v337 = vadd.f32 0.0, %v336
      %v338 = vpop.f32.mrb[0].mxu0
      %339 = vmatprep.mubr.f32.mxu0 0.0
      %340 = vmatmul.mubr.f32.gmra.mrb[0].mxu0 %v242
      %v341 = vpop.f32.mrb[0].mxu0
      %v342 = vadd.f32 0.0, %v341
      %v343 = vpop.f32.mrb[0].mxu0
      %344 = vmatprep.mubr.f32.mxu0 0.0
      %345 = vmatmul.mubr.f32.gmra.mrb[0].mxu0 %v245
      %v346 = vpop.f32.mrb[0].mxu0
      %v347 = vadd.f32 0.0, %v346
      %v348 = vpop.f32.mrb[0].mxu0
      %349 = vmatprep.mubr.f32.mxu0 0.0
      %350 = vmatmul.mubr.f32.gmra.mrb[0].mxu0 %v248
      %v351 = vpop.f32.mrb[0].mxu0
      %v352 = vadd.f32 0.0, %v351
      %v353 = vpop.f32.mrb[0].mxu0
      %354 = vdwg.mxu0
      %355 = vst.msk [vmem:[%s207] sm:$0xff] %vm225, %v317
      %356 = vst.msk [vmem:[%s207 + $0x8] sm:$0xff] %vm225, %v322
      %357 = vst.msk [vmem:[%s207 + $0x10] sm:$0xff] %vm225, %v327
      %358 = vst.msk [vmem:[%s207 + $0x18] sm:$0xff] %vm225, %v332
      %359 = vst.msk [vmem:[%s207 + $0x20] sm:$0xff] %vm225, %v337
      %360 = vst.msk [vmem:[%s207 + $0x28] sm:$0xff] %vm225, %v342
      %361 = vst.msk [vmem:[%s207 + $0x30] sm:$0xff] %vm225, %v347
      %362 = vst.msk [vmem:[%s207 + $0x38] sm:$0xff] %vm225, %v352
      %v363 = vld [vmem:[%s2] sm:$0xff]
      %v364 = vld [vmem:[%s2 + $0x8] sm:$0xff]
      %v366 = vsel %vm225, %v317, 0
      %v369 = vsel %vm225, %v322, 0
      %v372 = vsel %vm225, %v327, 0
      %v375 = vsel %vm225, %v332, 0
      %v378 = vsel %vm225, %v337, 0
      %v381 = vsel %vm225, %v342, 0
      %v384 = vsel %vm225, %v347, 0
      %v387 = vsel %vm225, %v352, 0
      %389 = vmatprep.subr.mxu0 0.0
      %390 = vmatpush1.msra.mxu0 %v363
      %391 = vmatprep.subr.mxu0 0.0
      %392 = vmatpush1.msra.mxu0 %v364
      %393 = vmatprep.subr.mxu0 0.0
      %394 = vmatpush1.msra.mxu0 0.0
      %395 = vmatprep.subr.mxu0 0.0
      %396 = vmatpush1.msra.mxu0 0.0
      %397 = vmatprep.subr.mxu0 0.0
      %398 = vmatpush1.msra.mxu0 0.0
      %399 = vmatprep.subr.mxu0 0.0
      %400 = vmatpush1.msra.mxu0 0.0
      %401 = vmatprep.subr.mxu0 0.0
      %402 = vmatpush1.msra.mxu0 0.0
      %403 = vmatprep.subr.mxu0 0.0
      %404 = vmatpush1.msra.mxu0 0.0
      %405 = vmatprep.subr.mxu0 0.0
      %406 = vmatpush1.msra.mxu0 0.0
      %407 = vmatprep.subr.mxu0 0.0
      %408 = vmatpush1.msra.mxu0 0.0
      %409 = vmatprep.subr.mxu0 0.0
      %410 = vmatpush1.msra.mxu0 0.0
      %411 = vmatprep.subr.mxu0 0.0
      %412 = vmatpush1.msra.mxu0 0.0
      %413 = vmatprep.subr.mxu0 0.0
      %414 = vmatpush1.msra.mxu0 0.0
      %415 = vmatprep.subr.mxu0 0.0
      %416 = vmatpush1.msra.mxu0 0.0
      %417 = vmatprep.subr.mxu0 0.0
      %418 = vmatpush1.msra.mxu0 0.0
      %419 = vmatprep.subr.mxu0 0.0
      %420 = vmatpush1.msra.mxu0 0.0
      %421 = vmatprep.subr.mxu0 0.0
      %422 = vmatpush1.msra.mxu0 0.0
      %423 = vmatprep.subr.mxu0 0.0
      %424 = vmatpush1.msra.mxu0 0.0
      %425 = vmatprep.subr.mxu0 0.0
      %426 = vmatpush1.msra.mxu0 0.0
      %427 = vmatprep.subr.mxu0 0.0
      %428 = vmatpush1.msra.mxu0 0.0
      %429 = vmatprep.subr.mxu0 0.0
      %430 = vmatpush1.msra.mxu0 0.0
      %431 = vmatprep.subr.mxu0 0.0
      %432 = vmatpush1.msra.mxu0 0.0
      %433 = vmatprep.subr.mxu0 0.0
      %434 = vmatpush1.msra.mxu0 0.0
      %435 = vmatprep.subr.mxu0 0.0
      %436 = vmatpush1.msra.mxu0 0.0
      %437 = vmatprep.subr.mxu0 0.0
      %438 = vmatpush1.msra.mxu0 0.0
      %439 = vmatprep.subr.mxu0 0.0
      %440 = vmatpush1.msra.mxu0 0.0
      %441 = vmatprep.subr.mxu0 0.0
      %442 = vmatpush1.msra.mxu0 0.0
      %443 = vmatprep.subr.mxu0 0.0
      %444 = vmatpush1.msra.mxu0 0.0
      %445 = vmatprep.subr.mxu0 0.0
      %446 = vmatpush1.msra.mxu0 0.0
      %447 = vmatprep.subr.mxu0 0.0
      %448 = vmatpush1.msra.mxu0 0.0
      %449 = vmatprep.subr.mxu0 0.0
      %450 = vmatpush1.msra.mxu0 0.0
      %451 = vmatprep.subr.mxu0 0.0
      %452 = vmatpush1.msra.mxu0 0.0
      %453 = vmatprep.mubr.f32.mxu0 0.0
      %454 = vmatmul.mubr.f32.gmra.mrb[0].mxu0 %v366
      %v455 = vpop.f32.mrb[0].mxu0
      %v456 = vadd.f32 0.0, %v455
      %v457 = vpop.f32.mrb[0].mxu0
      %458 = vmatprep.mubr.f32.mxu0 0.0
      %459 = vmatmul.mubr.f32.gmra.mrb[0].mxu0 %v369
      %v460 = vpop.f32.mrb[0].mxu0
      %v461 = vadd.f32 0.0, %v460
      %v462 = vpop.f32.mrb[0].mxu0
      %463 = vmatprep.mubr.f32.mxu0 0.0
      %464 = vmatmul.mubr.f32.gmra.mrb[0].mxu0 %v372
      %v465 = vpop.f32.mrb[0].mxu0
      %v466 = vadd.f32 0.0, %v465
      %v467 = vpop.f32.mrb[0].mxu0
      %468 = vmatprep.mubr.f32.mxu0 0.0
      %469 = vmatmul.mubr.f32.gmra.mrb[0].mxu0 %v375
      %v470 = vpop.f32.mrb[0].mxu0
      %v471 = vadd.f32 0.0, %v470
      %v472 = vpop.f32.mrb[0].mxu0
      %473 = vmatprep.mubr.f32.mxu0 0.0
      %474 = vmatmul.mubr.f32.gmra.mrb[0].mxu0 %v378
      %v475 = vpop.f32.mrb[0].mxu0
      %v476 = vadd.f32 0.0, %v475
      %v477 = vpop.f32.mrb[0].mxu0
      %478 = vmatprep.mubr.f32.mxu0 0.0
      %479 = vmatmul.mubr.f32.gmra.mrb[0].mxu0 %v381
      %v480 = vpop.f32.mrb[0].mxu0
      %v481 = vadd.f32 0.0, %v480
      %v482 = vpop.f32.mrb[0].mxu0
      %483 = vmatprep.mubr.f32.mxu0 0.0
      %484 = vmatmul.mubr.f32.gmra.mrb[0].mxu0 %v384
      %v485 = vpop.f32.mrb[0].mxu0
      %v486 = vadd.f32 0.0, %v485
      %v487 = vpop.f32.mrb[0].mxu0
      %488 = vmatprep.mubr.f32.mxu0 0.0
      %489 = vmatmul.mubr.f32.gmra.mrb[0].mxu0 %v387
      %v490 = vpop.f32.mrb[0].mxu0
      %v491 = vadd.f32 0.0, %v490
      %v492 = vpop.f32.mrb[0].mxu0
      %493 = vdwg.mxu0
      %vm494 = vcmask 31744
      %495 = vst.msk [vmem:[%s213] sm:$0xff] %vm494, %v456
      %496 = vst.msk [vmem:[%s213 + $0x8] sm:$0xff] %vm494, %v461
      %497 = vst.msk [vmem:[%s213 + $0x10] sm:$0xff] %vm494, %v466
      %498 = vst.msk [vmem:[%s213 + $0x18] sm:$0xff] %vm494, %v471
      %499 = vst.msk [vmem:[%s213 + $0x20] sm:$0xff] %vm494, %v476
      %500 = vst.msk [vmem:[%s213 + $0x28] sm:$0xff] %vm494, %v481
      %501 = vst.msk [vmem:[%s213 + $0x30] sm:$0xff] %vm494, %v486
      %502 = vst.msk [vmem:[%s213 + $0x38] sm:$0xff] %vm494, %v491
      %s503 = smul.u32 8, %s16
      %p504 = scmp.lt.s32.totalorder %s503, 15
      %s505 = scalar_select %p504, %s503, 15
      %s506 = smul.addr %s505, 8
      %s507 = scalar_lea.vmem %s3, %s506
      %s508 = smul.u32 8, %s16
      %p509 = scmp.lt.s32.totalorder %s508, 15
      %s510 = scalar_select %p509, %s508, 15
      %s511 = smul.addr %s510, 8
      %s512 = scalar_lea.vmem %s4, %s511
      // Predicated region
      $region33: #{tpu_custom_call.1} parent=31 // pred_check
        %p513 = pneg %p102
      $region34: #{tpu_custom_call.1} parent=31 // pred_check_branch
        %515 = sbr.rel (%p513) target = $region36
      $region35: #{tpu_custom_call.1} parent=31 // pred_region
        %s516 = smul.u32 8, %s16
      $region36: #{tpu_custom_call.1} parent=31 // pred_fallthru
        _
      // Predicated region
      $region37: #{tpu_custom_call.1} parent=31 // pred_check
        %p517 = pneg %p128
      $region38: #{tpu_custom_call.1} parent=31 // pred_check_branch
        %519 = sbr.rel (%p517) target = $region40
      $region39: #{tpu_custom_call.1} parent=31 // pred_region
        %s520 = smul.u32 8, %s16
      $region40: #{tpu_custom_call.1} parent=31 // pred_fallthru
        _
    $region32: #{tpu_custom_call.1} parent=5 // pred_fallthru
      _
    %p521 = scmp.le.s32.totalorder 2, %s11
    // Predicated region
    $region41: #{tpu_custom_call.1} parent=5 // pred_check
      %p522 = pneg %p521
    $region42: #{tpu_custom_call.1} parent=5 // pred_check_branch
      %524 = sbr.rel (%p522) target = $region44
    $region43: #{tpu_custom_call.1} parent=5 // pred_region
      %s525 = ssub.s32 %s11, 2
      // Predicated region
      $region45: #{tpu_custom_call.1} parent=43 // pred_check
        %p526 = pneg %p108
      $region46: #{tpu_custom_call.1} parent=43 // pred_check_branch
        %528 = sbr.rel (%p526) target = $region48
      $region47: #{tpu_custom_call.1} parent=43 // pred_region
        %s529 = smul.u32 8, %s17
        %p530 = scmp.lt.s32.totalorder %s529, 15
        %s531 = scalar_select %p530, %s529, 15
        %s532 = smul.addr %s531, 8
        %s533 = scalar_lea.vmem %s3, %s532
      $region48: #{tpu_custom_call.1} parent=43 // pred_fallthru
        _
      // Predicated region
      $region49: #{tpu_custom_call.1} parent=43 // pred_check
        %p534 = pneg %p134
      $region50: #{tpu_custom_call.1} parent=43 // pred_check_branch
        %536 = sbr.rel (%p534) target = $region52
      $region51: #{tpu_custom_call.1} parent=43 // pred_region
        %s537 = smul.u32 8, %s17
        %p538 = scmp.lt.s32.totalorder %s537, 15
        %s539 = scalar_select %p538, %s537, 15
        %s540 = smul.addr %s539, 8
        %s541 = scalar_lea.vmem %s4, %s540
      $region52: #{tpu_custom_call.1} parent=43 // pred_fallthru
        _
    $region44: #{tpu_custom_call.1} parent=5 // pred_fallthru
      _
  $region6: #{tpu_custom_call.1} parent=0 // loop_footer
    %s15 = sadd.s32 1, %s11
  $region7: #{tpu_custom_call.1} parent=0 // loop_footer_branch
    %10 = sbr.rel target = $region3
  $region8: #{tpu_custom_call.1} parent=0 // loop_exit
    _

</llo_original>
